<compile_context>
chip_gen: v7x
topology: tpu7x:2x2x1
jax: 0.10.0
libtpu: 0.0.40
codegen_flags: <defaults>
</compile_context>

<pallas_src>
import functools

import jax
import jax.numpy as jnp
import numpy as np
from jax.experimental import pallas as pl
from jax.experimental.pallas import tpu as pltpu


# ---------------------------------------------------------------------------
# Kernel
# ---------------------------------------------------------------------------
def mlp_kernel(*refs, num_layers, chunk, vpu_first_layer):
    """Fused MLP, transposed layout: features on sublanes, rows (N) on lanes.

    refs = (xT, w_in^T, b_in, [w_hid^T, b_hid,] w_out^T, b_out, out^T)
    The (.., tile_n) tile is processed in `chunk`-lane column slabs so the
    per-layer (hidden, chunk) activations stay register-resident across the
    whole layer stack instead of bouncing through VMEM between matmuls.
    """
    if num_layers > 0:
        (xT_ref, w_in_ref, b_in_ref, w_hid_ref, b_hid_ref,
         w_out_ref, b_out_ref, oT_ref) = refs
    else:
        (xT_ref, w_in_ref, b_in_ref, w_out_ref, b_out_ref, oT_ref) = refs
        w_hid_ref = b_hid_ref = None

    hidden, in_dim = w_in_ref.shape
    tile_n = xT_ref.shape[-1]
    n_chunks = tile_n // chunk
    cdt = w_out_ref.dtype                    # MXU operand dtype (f32 or bf16)

    b_in = b_in_ref[...].astype(jnp.float32)       # (hidden, 1)
    b_out = b_out_ref[...].astype(jnp.float32)     # (out_dim, 1)

    # Static unroll: n_chunks is small (<= 4) by construction.
    for c in range(n_chunks):
        col = c * chunk

        if vpu_first_layer:
            # K = in_dim is tiny: two broadcast-FMAs on the VPU beat an almost
            # empty MXU pass; keep this path (and the x tile) in f32.
            xc = xT_ref[:, col:col + chunk].astype(jnp.float32)   # (in_dim, chunk)
            h = w_in_ref[:, 0:1].astype(jnp.float32) * xc[0:1, :]
            for k in range(1, in_dim):
                h = h + w_in_ref[:, k:k + 1].astype(jnp.float32) * xc[k:k + 1, :]
        else:
            xc = xT_ref[:, col:col + chunk].astype(w_in_ref.dtype)
            h = jnp.dot(w_in_ref[...], xc, preferred_element_type=jnp.float32)
        h = jnp.maximum(h + b_in, 0.0)

        # Hidden layers (static unroll over compile-time num_layers).
        for i in range(num_layers):
            h = jnp.dot(w_hid_ref[i], h.astype(cdt),
                        preferred_element_type=jnp.float32)
            h = jnp.maximum(h + b_hid_ref[i].astype(jnp.float32), 0.0)

        # Output layer (no activation, matches the module).
        o = jnp.dot(w_out_ref[...], h.astype(cdt),
                    preferred_element_type=jnp.float32)
        oT_ref[:, col:col + chunk] = (o + b_out).astype(oT_ref.dtype)


# ---------------------------------------------------------------------------
# Hardware introspection / heuristics
# ---------------------------------------------------------------------------
@functools.lru_cache()
def _tpu_info():
    """(device_kind_lowercase, per-core VMEM bytes), with safe fallbacks."""
    kind = ""
    try:
        dev = jax.devices()[0]
        if dev.platform == "tpu":
            kind = str(getattr(dev, "device_kind", "")).lower()
    except Exception:
        pass
    try:
        vmem_bytes = int(pltpu.get_tpu_info().vmem_capacity_bytes)
    except Exception:
        vmem_bytes = (64 if "v7" in kind else 128) * 1024 * 1024
    return kind, vmem_bytes


def _default_param_dtype(kind):
    # bf16 is the native MXU operand dtype on v6e/v7x (more throughput, half
    # the resident-weight VMEM).  v5e has no bf16 VPU, so the per-layer casts
    # would land on the elementwise critical path there -> keep f32.
    if any(tag in kind for tag in ("v6", "v7")):
        return jnp.bfloat16
    return jnp.float32


@functools.lru_cache()
def _pipeline_mode_supported():
    """Explicit feature detection for BlockSpec(pipeline_mode=pl.Buffered(1))."""
    if not hasattr(pl, "Buffered"):
        return False
    try:
        pl.BlockSpec((8, 128), lambda i: (0, 0), pipeline_mode=pl.Buffered(1))
        return True
    except Exception:
        return False


def _choose_tile_n(N, hidden):
    """Hidden-aware row tile: large enough to amortize the ~0.35us grid-step
    overhead, small enough that (hidden, tile_n) activations do not blow the
    vreg file, and >= 2 grid steps whenever possible so v7x can shard the
    'parallel' axis across its two TensorCores."""
    if N % 128 != 0:
        return N                                  # single full-array block
    target = 512 if hidden <= 128 else 256
    target = min(target, max(128, N // 2))        # prefer >= 2 grid steps
    t = max(128, (min(target, N) // 128) * 128)
    while N % t != 0:
        t -= 128
    return t


def _choose_chunk(tile_n, hidden):
    """Column-chunk width so one (hidden, chunk) f32 activation is <= ~16 vregs."""
    if tile_n % 128 != 0:
        return tile_n
    c = (max(16 * 1024 // max(hidden, 1), 128) // 128) * 128
    c = max(128, min(c, tile_n, 512))
    while tile_n % c != 0:
        c -= 128
    return c


# ---------------------------------------------------------------------------
# Wrapper
# ---------------------------------------------------------------------------
def fc_hypernet_forward(x, params, *, tile_n=None, param_dtype=None):
    """x: (N, in_dim).  params: (w_in, b_in, w_hid, b_hid, w_out, b_out) with
    weights stored as (in, out) like init_params below."""
    w_in, b_in, w_hid, b_hid, w_out, b_out = params
    N, in_dim = x.shape
    hidden = w_in.shape[1]
    out_dim = w_out.shape[1]
    L = w_hid.shape[0]

    kind, vmem_phys = _tpu_info()
    if param_dtype is None:
        param_dtype = _default_param_dtype(kind)
    cdt = jnp.dtype(param_dtype)

    if tile_n is None:
        tile_n = _choose_tile_n(N, hidden)
    assert N % tile_n == 0, "pad N to a multiple of tile_n"
    assert tile_n % 128 == 0 or tile_n == N, "tile_n must be 128-aligned or == N"
    n_steps = N // tile_n
    chunk = _choose_chunk(tile_n, hidden)

    vpu_first = in_dim <= 8          # tiny contraction depth -> VPU FMAs

    # Cast only matmul weights to the MXU operand dtype (never biases; never
    # the first-layer weight on the VPU path).  Accumulation stays f32.
    cast_w = (lambda a: a.astype(cdt)) if cdt != jnp.dtype(jnp.float32) else (lambda a: a)
    w_in_c = w_in if vpu_first else cast_w(w_in)
    w_hid_c = cast_w(w_hid)
    w_out_c = cast_w(w_out)

    # One-time transposes so the kernel is lane-dense in N.
    xT = x.T                                   # (in_dim, N)
    w_in_t = w_in_c.T                          # (hidden, in_dim)
    b_in_t = b_in.reshape(hidden, 1)           # (hidden, 1)  f32
    w_out_t = w_out_c.T                        # (out_dim, hidden)
    b_out_t = b_out.reshape(out_dim, 1)        # (out_dim, 1) f32

    args = [xT, w_in_t, b_in_t]
    if L > 0:
        w_hid_t = jnp.swapaxes(w_hid_c, 1, 2)  # (L, hidden, hidden)
        b_hid_t = jnp.swapaxes(b_hid, 1, 2)    # (L, hidden, 1) f32
        args += [w_hid_t, b_hid_t]
    # num_layers == 0: dummy hidden stack is dropped entirely (no dead DMA).
    args += [w_out_t, b_out_t]

    kernel = functools.partial(mlp_kernel, num_layers=L, chunk=chunk,
                               vpu_first_layer=vpu_first)

    flops = 2 * N * (in_dim * hidden + L * hidden * hidden + hidden * out_dim)
    weight_bytes = sum(int(np.prod(a.shape)) * a.dtype.itemsize for a in args[1:])
    io_bytes = int(x.size * x.dtype.itemsize + N * out_dim * x.dtype.itemsize)
    cost = pl.CostEstimate(flops=flops, transcendentals=0,
                           bytes_accessed=weight_bytes + io_bytes)

    # Generation-aware scoped-VMEM cap (v7x: 64 MiB physical -> cap ~48 MiB).
    vmem_cap = min(int(0.75 * vmem_phys), 100 * 1024 * 1024)

    def build(single_buffer_weights):
        wkw = ({"pipeline_mode": pl.Buffered(1)} if single_buffer_weights else {})

        def const_spec(shape):
            # Grid-invariant block: whole weight stack stays resident in VMEM.
            return pl.BlockSpec(shape, lambda *_: (0,) * len(shape), **wkw)

        in_specs = [pl.BlockSpec((in_dim, tile_n), lambda i: (0, i)),   # x^T tile
                    const_spec(w_in_t.shape),                           # w_in^T
                    const_spec(b_in_t.shape)]                           # b_in
        if L > 0:
            in_specs += [const_spec(w_hid_t.shape),                     # w_hid^T
                         const_spec(b_hid_t.shape)]                     # b_hid
        in_specs += [const_spec(w_out_t.shape),                         # w_out^T
                     const_spec(b_out_t.shape)]                         # b_out

        # Honest VMEM budget: weights x1 (single-buffered) or x2, double-
        # buffered x/out tiles, live chunk activations, compiler headroom.
        w_mult = 1 if single_buffer_weights else 2
        tile_io = 2 * tile_n * (in_dim * xT.dtype.itemsize
                                + out_dim * jnp.dtype(x.dtype).itemsize)
        act = 4 * hidden * chunk * 4
        vmem_limit = int(min(max(w_mult * weight_bytes + tile_io + act
                                 + 4 * 1024 * 1024,
                                 16 * 1024 * 1024),
                             vmem_cap))

        return pl.pallas_call(
            kernel,
            out_shape=jax.ShapeDtypeStruct((out_dim, N), x.dtype),
            grid_spec=pltpu.PrefetchScalarGridSpec(
                num_scalar_prefetch=0,
                grid=(n_steps,),
                in_specs=in_specs,
                out_specs=pl.BlockSpec((out_dim, tile_n), lambda i: (0, i)),
            ),
            compiler_params=pltpu.CompilerParams(
                dimension_semantics=("parallel",),
                vmem_limit_bytes=vmem_limit),
            cost_estimate=cost,
        )

    if _pipeline_mode_supported():
        try:
            outT = build(True)(*args)
        except (TypeError, NotImplementedError, ValueError,
                pltpu.LoweringException):
            # Only pipeline_mode-specific rejections fall back to default
            # double-buffered weights; genuine kernel / VMEM errors propagate.
            outT = build(False)(*args)
    else:
        outT = build(False)(*args)

    return outT.T                               # (N, out_dim)


# ---------------------------------------------------------------------------
# Init / reference
# ---------------------------------------------------------------------------
def init_params(key, in_dim, hidden_dim, out_dim, num_layers):
    """Deterministic init mimicking torch.nn.Linear default U[-1/sqrt(fan_in), +]."""
    ks = jax.random.split(key, 6)

    def u(k, shape, fan_in):
        bound = 1.0 / np.sqrt(fan_in)
        return jax.random.uniform(k, shape, jnp.float32, -bound, bound)

    w_in = u(ks[0], (in_dim, hidden_dim), in_dim)
    b_in = u(ks[1], (1, hidden_dim), in_dim)
    w_hid = u(ks[2], (num_layers, hidden_dim, hidden_dim), hidden_dim)
    b_hid = u(ks[3], (num_layers, 1, hidden_dim), hidden_dim)
    w_out = u(ks[4], (hidden_dim, out_dim), hidden_dim)
    b_out = u(ks[5], (1, out_dim), hidden_dim)
    return (w_in, b_in, w_hid, b_hid, w_out, b_out)


def reference_forward(x, params):
    w_in, b_in, w_hid, b_hid, w_out, b_out = params
    h = jnp.maximum(x @ w_in + b_in, 0.0)
    for i in range(w_hid.shape[0]):
        h = jnp.maximum(h @ w_hid[i] + b_hid[i], 0.0)
    return h @ w_out + b_out


if __name__ == "__main__":
    # Small shapes consistent with the module (coordinate-MLP style hyper-net).
    N, in_dim, hidden_dim, out_dim, num_layers = 256, 2, 32, 3, 2

    key = jax.random.PRNGKey(0)
    kx, kp = jax.random.split(key)
    x = jax.random.normal(kx, (N, in_dim), dtype=jnp.float32)
    params = init_params(kp, in_dim, hidden_dim, out_dim, num_layers)

    ref = reference_forward(x, params)

    # 1) f32 end-to-end: exact-tolerance correctness check.
    out_f32 = jax.block_until_ready(
        fc_hypernet_forward(x, params, param_dtype=jnp.float32))
    np.testing.assert_allclose(np.asarray(out_f32), np.asarray(ref),
                               rtol=1e-5, atol=1e-5)

    # 2) Default (generation-aware) path: bf16 MXU operands on v6e/v7x,
    #    f32 on v5e.  Looser tolerance covers the bf16-weight case.
    out_auto = jax.block_until_ready(fc_hypernet_forward(x, params))
    np.testing.assert_allclose(np.asarray(out_auto), np.asarray(ref),
                               rtol=5e-2, atol=1e-1)

    print("KERNEL_OK")
</pallas_src>

<mosaic_0001>
module attributes {stable_mosaic.version = 11 : i64} {
  func.func @mlp_kernel(%arg0: i32, %arg1: memref<2x128xf32, #tpu.memory_space<vmem>>, %arg2: memref<32x2xf32, #tpu.memory_space<vmem>>, %arg3: memref<32x1xf32, #tpu.memory_space<vmem>>, %arg4: memref<2x32x32xf32, #tpu.memory_space<vmem>>, %arg5: memref<2x32x1xf32, #tpu.memory_space<vmem>>, %arg6: memref<3x32xf32, #tpu.memory_space<vmem>>, %arg7: memref<3x1xf32, #tpu.memory_space<vmem>>, %arg8: memref<3x128xf32, #tpu.memory_space<vmem>>) attributes {dimension_semantics = [#tpu.dimension_semantics<parallel>], iteration_bounds = array<i64: 2>, scalar_prefetch = 0 : i64, scratch_operands = 0 : i64, tpu.core_type = #tpu.core_type<tc>, window_params = [{transform_indices = @transform_0, window_bounds = array<i64: 2, 128>}, {pipeline_mode = #tpu.pipeline_mode<synchronous>, transform_indices = @transform_1, window_bounds = array<i64: 32, 2>}, {pipeline_mode = #tpu.pipeline_mode<synchronous>, transform_indices = @transform_2, window_bounds = array<i64: 32, 1>}, {pipeline_mode = #tpu.pipeline_mode<synchronous>, transform_indices = @transform_3, window_bounds = array<i64: 2, 32, 32>}, {pipeline_mode = #tpu.pipeline_mode<synchronous>, transform_indices = @transform_4, window_bounds = array<i64: 2, 32, 1>}, {pipeline_mode = #tpu.pipeline_mode<synchronous>, transform_indices = @transform_5, window_bounds = array<i64: 3, 32>}, {pipeline_mode = #tpu.pipeline_mode<synchronous>, transform_indices = @transform_6, window_bounds = array<i64: 3, 1>}, {transform_indices = @transform_7, window_bounds = array<i64: 3, 128>}]} {
    %c0 = arith.constant 0 : index
    %c0_0 = arith.constant 0 : index
    %0 = vector.load %arg3[%c0, %c0_0] : memref<32x1xf32, #tpu.memory_space<vmem>>, vector<32x1xf32>
    %c0_1 = arith.constant 0 : index
    %c0_2 = arith.constant 0 : index
    %1 = vector.load %arg7[%c0_1, %c0_2] : memref<3x1xf32, #tpu.memory_space<vmem>>, vector<3x1xf32>
    %c0_3 = arith.constant 0 : index
    %c0_4 = arith.constant 0 : index
    %2 = vector.load %arg1[%c0_3, %c0_4] : memref<2x128xf32, #tpu.memory_space<vmem>>, vector<2x128xf32>
    %c0_5 = arith.constant 0 : index
    %c0_6 = arith.constant 0 : index
    %3 = vector.load %arg2[%c0_5, %c0_6] : memref<32x2xf32, #tpu.memory_space<vmem>>, vector<32x1xf32>
    %4 = vector.extract_strided_slice %2 {offsets = [0, 0], sizes = [1, 128], strides = [1, 1]} : vector<2x128xf32> to vector<1x128xf32>
    %5 = vector.broadcast %3 : vector<32x1xf32> to vector<32x128xf32>
    %6 = vector.broadcast %4 : vector<1x128xf32> to vector<32x128xf32>
    %7 = arith.mulf %5, %6 : vector<32x128xf32>
    %c0_7 = arith.constant 0 : index
    %c1 = arith.constant 1 : index
    %8 = vector.load %arg2[%c0_7, %c1] : memref<32x2xf32, #tpu.memory_space<vmem>>, vector<32x1xf32>
    %9 = vector.extract_strided_slice %2 {offsets = [1, 0], sizes = [1, 128], strides = [1, 1]} : vector<2x128xf32> to vector<1x128xf32>
    %10 = vector.broadcast %8 : vector<32x1xf32> to vector<32x128xf32>
    %11 = vector.broadcast %9 : vector<1x128xf32> to vector<32x128xf32>
    %12 = arith.mulf %10, %11 : vector<32x128xf32>
    %13 = arith.addf %7, %12 : vector<32x128xf32>
    %14 = vector.broadcast %0 : vector<32x1xf32> to vector<32x128xf32>
    %15 = arith.addf %13, %14 : vector<32x128xf32>
    %cst = arith.constant 0.000000e+00 : f32
    %16 = vector.broadcast %cst : f32 to vector<32x128xf32>
    %17 = arith.maximumf %15, %16 : vector<32x128xf32>
    %c0_8 = arith.constant 0 : index
    %c0_9 = arith.constant 0 : index
    %c0_10 = arith.constant 0 : index
    %18 = vector.load %arg4[%c0_8, %c0_9, %c0_10] : memref<2x32x32xf32, #tpu.memory_space<vmem>>, vector<1x32x32xf32>
    %19 = vector.shape_cast %18 : vector<1x32x32xf32> to vector<32x32xf32>
    %cst_11 = arith.constant dense<0.000000e+00> : vector<32x128xf32>
    %20 = tpu.matmul %19, %17, %cst_11 {dimension_numbers = #tpu.dot_dimension_numbers<[1], [0], [0], [1], [0, 0, 1, 1], [], []>} : vector<32x32xf32>, vector<32x128xf32>, vector<32x128xf32> -> vector<32x128xf32>
    %c0_12 = arith.constant 0 : index
    %c0_13 = arith.constant 0 : index
    %c0_14 = arith.constant 0 : index
    %21 = vector.load %arg5[%c0_12, %c0_13, %c0_14] : memref<2x32x1xf32, #tpu.memory_space<vmem>>, vector<1x32x1xf32>
    %22 = vector.shape_cast %21 : vector<1x32x1xf32> to vector<32x1xf32>
    %23 = vector.broadcast %22 : vector<32x1xf32> to vector<32x128xf32>
    %24 = arith.addf %20, %23 : vector<32x128xf32>
    %cst_15 = arith.constant 0.000000e+00 : f32
    %25 = vector.broadcast %cst_15 : f32 to vector<32x128xf32>
    %26 = arith.maximumf %24, %25 : vector<32x128xf32>
    %c1_16 = arith.constant 1 : index
    %c0_17 = arith.constant 0 : index
    %c0_18 = arith.constant 0 : index
    %27 = vector.load %arg4[%c1_16, %c0_17, %c0_18] : memref<2x32x32xf32, #tpu.memory_space<vmem>>, vector<1x32x32xf32>
    %28 = vector.shape_cast %27 : vector<1x32x32xf32> to vector<32x32xf32>
    %cst_19 = arith.constant dense<0.000000e+00> : vector<32x128xf32>
    %29 = tpu.matmul %28, %26, %cst_19 {dimension_numbers = #tpu.dot_dimension_numbers<[1], [0], [0], [1], [0, 0, 1, 1], [], []>} : vector<32x32xf32>, vector<32x128xf32>, vector<32x128xf32> -> vector<32x128xf32>
    %c1_20 = arith.constant 1 : index
    %c0_21 = arith.constant 0 : index
    %c0_22 = arith.constant 0 : index
    %30 = vector.load %arg5[%c1_20, %c0_21, %c0_22] : memref<2x32x1xf32, #tpu.memory_space<vmem>>, vector<1x32x1xf32>
    %31 = vector.shape_cast %30 : vector<1x32x1xf32> to vector<32x1xf32>
    %32 = vector.broadcast %31 : vector<32x1xf32> to vector<32x128xf32>
    %33 = arith.addf %29, %32 : vector<32x128xf32>
    %cst_23 = arith.constant 0.000000e+00 : f32
    %34 = vector.broadcast %cst_23 : f32 to vector<32x128xf32>
    %35 = arith.maximumf %33, %34 : vector<32x128xf32>
    %c0_24 = arith.constant 0 : index
    %c0_25 = arith.constant 0 : index
    %36 = vector.load %arg6[%c0_24, %c0_25] : memref<3x32xf32, #tpu.memory_space<vmem>>, vector<3x32xf32>
    %cst_26 = arith.constant dense<0.000000e+00> : vector<3x128xf32>
    %37 = tpu.matmul %36, %35, %cst_26 {dimension_numbers = #tpu.dot_dimension_numbers<[1], [0], [0], [1], [0, 0, 1, 1], [], []>} : vector<3x32xf32>, vector<32x128xf32>, vector<3x128xf32> -> vector<3x128xf32>
    %38 = vector.broadcast %1 : vector<3x1xf32> to vector<3x128xf32>
    %39 = arith.addf %37, %38 : vector<3x128xf32>
    %c0_27 = arith.constant 0 : index
    %c0_28 = arith.constant 0 : index
    %40 = vector.load %arg8[%c0_27, %c0_28] : memref<3x128xf32, #tpu.memory_space<vmem>>, vector<3x128xf32>
    tpu.vector_store %arg8[%c0_27, %c0_28], %39 {strides = array<i32>} : memref<3x128xf32, #tpu.memory_space<vmem>>, vector<3x128xf32>,
    return
  }
  func.func @transform_0(%arg0: i32) -> (i32, i32) {
    %c0_i32 = arith.constant 0 : i32
    %c0_i32_0 = arith.constant 0 : i32
    return %c0_i32, %arg0 : i32, i32
  }
  func.func @transform_1(%arg0: i32) -> (i32, i32) {
    %c0_i32 = arith.constant 0 : i32
    %c0_i32_0 = arith.constant 0 : i32
    %c0_i32_1 = arith.constant 0 : i32
    return %c0_i32, %c0_i32_0 : i32, i32
  }
  func.func @transform_2(%arg0: i32) -> (i32, i32) {
    %c0_i32 = arith.constant 0 : i32
    %c0_i32_0 = arith.constant 0 : i32
    %c0_i32_1 = arith.constant 0 : i32
    return %c0_i32, %c0_i32_0 : i32, i32
  }
  func.func @transform_3(%arg0: i32) -> (i32, i32, i32) {
    %c0_i32 = arith.constant 0 : i32
    %c0_i32_0 = arith.constant 0 : i32
    %c0_i32_1 = arith.constant 0 : i32
    %c0_i32_2 = arith.constant 0 : i32
    return %c0_i32, %c0_i32_0, %c0_i32_1 : i32, i32, i32
  }
  func.func @transform_4(%arg0: i32) -> (i32, i32, i32) {
    %c0_i32 = arith.constant 0 : i32
    %c0_i32_0 = arith.constant 0 : i32
    %c0_i32_1 = arith.constant 0 : i32
    %c0_i32_2 = arith.constant 0 : i32
    return %c0_i32, %c0_i32_0, %c0_i32_1 : i32, i32, i32
  }
  func.func @transform_5(%arg0: i32) -> (i32, i32) {
    %c0_i32 = arith.constant 0 : i32
    %c0_i32_0 = arith.constant 0 : i32
    %c0_i32_1 = arith.constant 0 : i32
    return %c0_i32, %c0_i32_0 : i32, i32
  }
  func.func @transform_6(%arg0: i32) -> (i32, i32) {
    %c0_i32 = arith.constant 0 : i32
    %c0_i32_0 = arith.constant 0 : i32
    %c0_i32_1 = arith.constant 0 : i32
    return %c0_i32, %c0_i32_0 : i32, i32
  }
  func.func @transform_7(%arg0: i32) -> (i32, i32) {
    %c0_i32 = arith.constant 0 : i32
    %c0_i32_0 = arith.constant 0 : i32
    return %c0_i32, %arg0 : i32, i32
  }
}

</mosaic_0001>

<llo_original>
// kernel: tpu_custom_call.1
$region0: #{tpu_custom_call.1}
  #allocation0 [shape = 'u32[]', space=smem, size = 0x4, offset = 0x4, fixed_abs, tag = 'smem constant byte address 0x4 - core index']
  #allocation1 [shape = 'u32[144,128]{1,0:T(1,128)}', space=vmem, size = 0x12000, scoped, tag = 'internal scratch']
  %s0 = inlined_call_operand.vmem [shape: f32[2,256], index: 0, kind: input, shape index: {}]
  %s1 = inlined_call_operand.vmem [shape: f32[32,2], index: 1, kind: input, shape index: {}]
  %s2 = inlined_call_operand.vmem [shape: f32[32,1], index: 2, kind: input, shape index: {}]
  %s3 = inlined_call_operand.vmem [shape: f32[2,32,32], index: 3, kind: input, shape index: {}]
  %s4 = inlined_call_operand.vmem [shape: f32[2,32,1], index: 4, kind: input, shape index: {}]
  %s5 = inlined_call_operand.vmem [shape: f32[3,32], index: 5, kind: input, shape index: {}]
  %s6 = inlined_call_operand.vmem [shape: f32[3,1], index: 6, kind: input, shape index: {}]
  %s7 = inlined_call_operand.hbm [shape: f32[3,256], index: 7, kind: output, shape index: {}]
  %s8 = sld [smem:[#allocation0]]
  $region61: #{tpu_custom_call.1} parent=0
    _
  %s10 = ssub.s32 1, %s8
  %s11 = scalar_select 0, %s10, %s8
  $region1: #{tpu_custom_call.1} parent=0
    #allocation2 [shape = 'u8[4096]{0}', space=vmem, size = 0x1000, scoped, tag = 'output window, operand 0']
    #allocation3 [shape = 's32[2]{0}', space=sflag, size = 0x8, scoped, tag = 'scoped memory for tpu_custom_call.1']
    %12 = vsyncpa [#allocation3], 0
    %s13 = scalar_lea.sflag [#allocation3], 1
    %14 = vsyncpa %s13, 0
    loop: start=0, step=1, limit=4
    $region2: #{tpu_custom_call.1} parent=1 // loop_pre_header
      _
    $region3: #{tpu_custom_call.1} parent=1 // loop_header
      %s16 = sphi 0, %s20
      %p17 = scmp.ge.s32.totalorder %s16, 4
      %s26 = sphi 0, %s28
      %s29 = sphi 0, %s26
      %s30 = sphi 0, %s29
      %s46 = sphi 0, %s30
      %s50 = sphi 0, %s50
      %s52 = sphi 0, %s50
      %s53 = sphi 0, %s52
      %s67 = sphi 0, %s53
      %s71 = sphi 0, %s71
      %s73 = sphi 0, %s71
      %s74 = sphi 0, %s73
      %s88 = sphi 0, %s74
      %s92 = sphi 0, %s92
      %s94 = sphi 0, %s92
      %s95 = sphi 0, %s94
      %s109 = sphi 0, %s95
      %s113 = sphi 0, %s113
      %s115 = sphi 0, %s113
      %s116 = sphi 0, %s115
      %s130 = sphi 0, %s116
      %s134 = sphi 0, %s134
      %s136 = sphi 0, %s134
      %s137 = sphi 0, %s136
      %s151 = sphi 0, %s137
      %s155 = sphi 0, %s155
      %s157 = sphi 0, %s155
      %s158 = sphi 0, %s157
      %s172 = sphi 0, %s158
      %s178 = sphi 0, %s180
      %s181 = sphi 0, %s178
      %s182 = sphi 0, %s181
      %s198 = sphi 0, %s182
    $region4: #{tpu_custom_call.1} parent=1 // loop_header_branch
      %19 = sbr.rel (%p17) target = $region8
    $region5: #{tpu_custom_call.1} parent=1 // loop_body
      %s21 = ssub.s32 %s16, 1
      %s22 = ssub.s32 %s16, 2
      %s23 = sadd.s32 %s16, 1
      %s24 = ssub.s32 %s16, %s23
      %p25 = scmp.eq.s32.totalorder %s24, 0
      %s27 = sadd.s32 %s26, 1
      %s28 = scalar_select %p25, %s26, %s27
      %p31 = pneg %p25
      %p32 = scmp.eq.s32.totalorder %s16, 1
      %p33 = por %p31, %p32
      %p34 = scmp.ne.s32.totalorder %s26, %s29
      %p35 = scmp.eq.s32.totalorder %s16, 0
      %p36 = por %p34, %p35
      %p37 = scmp.ne.s32.totalorder %s26, %s29
      %p38 = scmp.eq.s32.totalorder %s21, 1
      %p39 = por %p37, %p38
      %p40 = scmp.ne.s32.totalorder %s29, %s30
      %p41 = scmp.eq.s32.totalorder %s21, 0
      %p42 = por %p40, %p41
      %p43 = scmp.ne.s32.totalorder %s29, %s30
      %p44 = scmp.eq.s32.totalorder %s22, 1
      %p45 = por %p43, %p44
      %p47 = scmp.ne.s32.totalorder %s30, %s46
      %p48 = scmp.eq.s32.totalorder %s22, 0
      %p49 = por %p47, %p48
      %s51 = sadd.s32 %s50, 1
      %p54 = scmp.eq.s32.totalorder %s16, 1
      %p55 = scmp.ne.s32.totalorder %s50, %s52
      %p56 = scmp.eq.s32.totalorder %s16, 0
      %p57 = por %p55, %p56
      %p58 = scmp.ne.s32.totalorder %s50, %s52
      %p59 = scmp.eq.s32.totalorder %s21, 1
      %p60 = por %p58, %p59
      %p61 = scmp.ne.s32.totalorder %s52, %s53
      %p62 = scmp.eq.s32.totalorder %s21, 0
      %p63 = por %p61, %p62
      %p64 = scmp.ne.s32.totalorder %s52, %s53
      %p65 = scmp.eq.s32.totalorder %s22, 1
      %p66 = por %p64, %p65
      %p68 = scmp.ne.s32.totalorder %s53, %s67
      %p69 = scmp.eq.s32.totalorder %s22, 0
      %p70 = por %p68, %p69
      %s72 = sadd.s32 %s71, 1
      %p75 = scmp.eq.s32.totalorder %s16, 1
      %p76 = scmp.ne.s32.totalorder %s71, %s73
      %p77 = scmp.eq.s32.totalorder %s16, 0
      %p78 = por %p76, %p77
      %p79 = scmp.ne.s32.totalorder %s71, %s73
      %p80 = scmp.eq.s32.totalorder %s21, 1
      %p81 = por %p79, %p80
      %p82 = scmp.ne.s32.totalorder %s73, %s74
      %p83 = scmp.eq.s32.totalorder %s21, 0
      %p84 = por %p82, %p83
      %p85 = scmp.ne.s32.totalorder %s73, %s74
      %p86 = scmp.eq.s32.totalorder %s22, 1
      %p87 = por %p85, %p86
      %p89 = scmp.ne.s32.totalorder %s74, %s88
      %p90 = scmp.eq.s32.totalorder %s22, 0
      %p91 = por %p89, %p90
      %s93 = sadd.s32 %s92, 1
      %p96 = scmp.eq.s32.totalorder %s16, 1
      %p97 = scmp.ne.s32.totalorder %s92, %s94
      %p98 = scmp.eq.s32.totalorder %s16, 0
      %p99 = por %p97, %p98
      %p100 = scmp.ne.s32.totalorder %s92, %s94
      %p101 = scmp.eq.s32.totalorder %s21, 1
      %p102 = por %p100, %p101
      %p103 = scmp.ne.s32.totalorder %s94, %s95
      %p104 = scmp.eq.s32.totalorder %s21, 0
      %p105 = por %p103, %p104
      %p106 = scmp.ne.s32.totalorder %s94, %s95
      %p107 = scmp.eq.s32.totalorder %s22, 1
      %p108 = por %p106, %p107
      %p110 = scmp.ne.s32.totalorder %s95, %s109
      %p111 = scmp.eq.s32.totalorder %s22, 0
      %p112 = por %p110, %p111
      %s114 = sadd.s32 %s113, 1
      %p117 = scmp.eq.s32.totalorder %s16, 1
      %p118 = scmp.ne.s32.totalorder %s113, %s115
      %p119 = scmp.eq.s32.totalorder %s16, 0
      %p120 = por %p118, %p119
      %p121 = scmp.ne.s32.totalorder %s113, %s115
      %p122 = scmp.eq.s32.totalorder %s21, 1
      %p123 = por %p121, %p122
      %p124 = scmp.ne.s32.totalorder %s115, %s116
      %p125 = scmp.eq.s32.totalorder %s21, 0
      %p126 = por %p124, %p125
      %p127 = scmp.ne.s32.totalorder %s115, %s116
      %p128 = scmp.eq.s32.totalorder %s22, 1
      %p129 = por %p127, %p128
      %p131 = scmp.ne.s32.totalorder %s116, %s130
      %p132 = scmp.eq.s32.totalorder %s22, 0
      %p133 = por %p131, %p132
      %s135 = sadd.s32 %s134, 1
      %p138 = scmp.eq.s32.totalorder %s16, 1
      %p139 = scmp.ne.s32.totalorder %s134, %s136
      %p140 = scmp.eq.s32.totalorder %s16, 0
      %p141 = por %p139, %p140
      %p142 = scmp.ne.s32.totalorder %s134, %s136
      %p143 = scmp.eq.s32.totalorder %s21, 1
      %p144 = por %p142, %p143
      %p145 = scmp.ne.s32.totalorder %s136, %s137
      %p146 = scmp.eq.s32.totalorder %s21, 0
      %p147 = por %p145, %p146
      %p148 = scmp.ne.s32.totalorder %s136, %s137
      %p149 = scmp.eq.s32.totalorder %s22, 1
      %p150 = por %p148, %p149
      %p152 = scmp.ne.s32.totalorder %s137, %s151
      %p153 = scmp.eq.s32.totalorder %s22, 0
      %p154 = por %p152, %p153
      %s156 = sadd.s32 %s155, 1
      %p159 = scmp.eq.s32.totalorder %s16, 1
      %p160 = scmp.ne.s32.totalorder %s155, %s157
      %p161 = scmp.eq.s32.totalorder %s16, 0
      %p162 = por %p160, %p161
      %p163 = scmp.ne.s32.totalorder %s155, %s157
      %p164 = scmp.eq.s32.totalorder %s21, 1
      %p165 = por %p163, %p164
      %p166 = scmp.ne.s32.totalorder %s157, %s158
      %p167 = scmp.eq.s32.totalorder %s21, 0
      %p168 = por %p166, %p167
      %p169 = scmp.ne.s32.totalorder %s157, %s158
      %p170 = scmp.eq.s32.totalorder %s22, 1
      %p171 = por %p169, %p170
      %p173 = scmp.ne.s32.totalorder %s158, %s172
      %p174 = scmp.eq.s32.totalorder %s22, 0
      %p175 = por %p173, %p174
      %s176 = ssub.s32 %s16, %s23
      %p177 = scmp.eq.s32.totalorder %s176, 0
      %s179 = sadd.s32 %s178, 1
      %s180 = scalar_select %p177, %s178, %s179
      %p183 = pneg %p177
      %p184 = scmp.eq.s32.totalorder %s16, 1
      %p185 = por %p183, %p184
      %p186 = scmp.ne.s32.totalorder %s178, %s181
      %p187 = scmp.eq.s32.totalorder %s16, 0
      %p188 = por %p186, %p187
      %p189 = scmp.ne.s32.totalorder %s178, %s181
      %p190 = scmp.eq.s32.totalorder %s21, 1
      %p191 = por %p189, %p190
      %p192 = scmp.ne.s32.totalorder %s181, %s182
      %p193 = scmp.eq.s32.totalorder %s21, 0
      %p194 = por %p192, %p193
      %p195 = scmp.ne.s32.totalorder %s181, %s182
      %p196 = scmp.eq.s32.totalorder %s22, 1
      %p197 = por %p195, %p196
      %p199 = scmp.ne.s32.totalorder %s182, %s198
      %p200 = scmp.eq.s32.totalorder %s22, 0
      %p201 = por %p199, %p200
      %p202 = scmp.le.s32.totalorder 1, %s16
      %p203 = scmp.lt.s32.totalorder %s16, 3
      %p204 = pnand %p202, %p203
      %p205 = pneg %p204
      // Predicated region
      $region9: #{tpu_custom_call.1} parent=5 // pred_check
        _
      $region10: #{tpu_custom_call.1} parent=5 // pred_check_branch
        %207 = sbr.rel (%p204) target = $region12
      $region11: #{tpu_custom_call.1} parent=5 // pred_region
        %s208 = ssub.s32 %s16, 1
        // Predicated region
        $region13: #{tpu_custom_call.1} parent=11 // pred_check
          %p209 = pneg %p63
        $region14: #{tpu_custom_call.1} parent=11 // pred_check_branch
          %211 = sbr.rel (%p209) target = $region16
        $region15: #{tpu_custom_call.1} parent=11 // pred_region
          _
        $region16: #{tpu_custom_call.1} parent=11 // pred_fallthru
          _
        // Predicated region
        $region17: #{tpu_custom_call.1} parent=11 // pred_check
          %p212 = pneg %p84
        $region18: #{tpu_custom_call.1} parent=11 // pred_check_branch
          %214 = sbr.rel (%p212) target = $region20
        $region19: #{tpu_custom_call.1} parent=11 // pred_region
          _
        $region20: #{tpu_custom_call.1} parent=11 // pred_fallthru
          _
        // Predicated region
        $region21: #{tpu_custom_call.1} parent=11 // pred_check
          %p215 = pneg %p105
        $region22: #{tpu_custom_call.1} parent=11 // pred_check_branch
          %217 = sbr.rel (%p215) target = $region24
        $region23: #{tpu_custom_call.1} parent=11 // pred_region
          _
        $region24: #{tpu_custom_call.1} parent=11 // pred_fallthru
          _
        // Predicated region
        $region25: #{tpu_custom_call.1} parent=11 // pred_check
          %p218 = pneg %p126
        $region26: #{tpu_custom_call.1} parent=11 // pred_check_branch
          %220 = sbr.rel (%p218) target = $region28
        $region27: #{tpu_custom_call.1} parent=11 // pred_region
          _
        $region28: #{tpu_custom_call.1} parent=11 // pred_fallthru
          _
        // Predicated region
        $region29: #{tpu_custom_call.1} parent=11 // pred_check
          %p221 = pneg %p147
        $region30: #{tpu_custom_call.1} parent=11 // pred_check_branch
          %223 = sbr.rel (%p221) target = $region32
        $region31: #{tpu_custom_call.1} parent=11 // pred_region
          _
        $region32: #{tpu_custom_call.1} parent=11 // pred_fallthru
          _
        // Predicated region
        $region33: #{tpu_custom_call.1} parent=11 // pred_check
          %p224 = pneg %p168
        $region34: #{tpu_custom_call.1} parent=11 // pred_check_branch
          %226 = sbr.rel (%p224) target = $region36
        $region35: #{tpu_custom_call.1} parent=11 // pred_region
          _
        $region36: #{tpu_custom_call.1} parent=11 // pred_fallthru
          _
      $region12: #{tpu_custom_call.1} parent=5 // pred_fallthru
        _
      %p227 = scmp.lt.s32.totalorder %s16, 2
      // Predicated region
      $region37: #{tpu_custom_call.1} parent=5 // pred_check
        %p228 = pneg %p227
      $region38: #{tpu_custom_call.1} parent=5 // pred_check_branch
        %230 = sbr.rel (%p228) target = $region40
      $region39: #{tpu_custom_call.1} parent=5 // pred_region
        // Predicated region
        $region41: #{tpu_custom_call.1} parent=39 // pred_check
          %p231 = pneg %p36
        $region42: #{tpu_custom_call.1} parent=39 // pred_check_branch
          %233 = sbr.rel (%p231) target = $region44
        $region43: #{tpu_custom_call.1} parent=39 // pred_region
          %p234 = scmp.lt.s32.totalorder %s16, 1
          %s235 = scalar_select %p234, %s16, 1
          %s236 = smul.addr %s235, 2
          %s237 = scalar_lea.vmem %s0, %s236
        $region44: #{tpu_custom_call.1} parent=39 // pred_fallthru
          _
      $region40: #{tpu_custom_call.1} parent=5 // pred_fallthru
        _
      %p238 = scmp.le.s32.totalorder 1, %s16
      %p239 = scmp.lt.s32.totalorder %s16, 3
      %p240 = pnand %p238, %p239
      %p241 = pneg %p240
      // Predicated region
      $region45: #{tpu_custom_call.1} parent=5 // pred_check
        _
      $region46: #{tpu_custom_call.1} parent=5 // pred_check_branch
        %243 = sbr.rel (%p240) target = $region48
      $region47: #{tpu_custom_call.1} parent=5 // pred_region
        %s244 = ssub.s32 %s16, 1
        %p245 = scmp.lt.s32.totalorder %s21, 1
        %s246 = scalar_select %p245, %s21, 1
        %s247 = smul.addr %s246, 2
        %s248 = scalar_lea.vmem %s0, %s247
        %p249 = pneg %p42
        %p250 = pneg %p39
        %p251 = pneg %p63
        %p252 = pneg %p60
        %p253 = pneg %p84
        %p254 = pneg %p81
        %p255 = pneg %p105
        %p256 = pneg %p102
        %p257 = pneg %p126
        %p258 = pneg %p123
        %p259 = pneg %p147
        %p260 = pneg %p144
        %p261 = pneg %p168
        %p262 = pneg %p165
        %p263 = pneg %p194
        %p264 = pneg %p191
        %s265 = sand.u32 %s181, 1
        %s266 = scalar_lea.sflag [#allocation3], %s265
        %s267 = sand.u32 %s181, 1
        %s268 = smul.addr %s267, 4
        %s269 = scalar_lea.vmem [#allocation2], %s268
        %p270 = scmp.lt.s32.totalorder %s21, 1
        %s271 = scalar_select %p270, %s21, 1
        %s272 = smul.addr %s271, 2
        %s273 = scalar_lea.vmem %s0, %s272
        %v274 = vld [vmem:[%s2] sm:$0xff]
        %v275 = vld [vmem:[%s2 + $0x8] sm:$0xff]
        %v276 = vld [vmem:[%s2 + $0x10] sm:$0xff]
        %v277 = vld [vmem:[%s2 + $0x18] sm:$0xff]
        %v278 = vld [vmem:[%s6] sm:$0x7]
        %v279 = vld [vmem:[%s273] sm:$0x3]
        %v280 = vld [vmem:[%s1] sm:$0xff]
        %v281 = vld [vmem:[%s1 + $0x8] sm:$0xff]
        %v282 = vld [vmem:[%s1 + $0x10] sm:$0xff]
        %v283 = vld [vmem:[%s1 + $0x18] sm:$0xff]
        %285 = vset.pattern.permute.xlu0 0
        %286 = vperm.xlu0 %285, %v280
        %v287 = vpop.permute.xlu0 %286
        %290 = vset.pattern.permute.xlu0 0
        %291 = vperm.xlu0 %290, %v281
        %v292 = vpop.permute.xlu0 %291
        %295 = vset.pattern.permute.xlu0 0
        %296 = vperm.xlu0 %295, %v282
        %v297 = vpop.permute.xlu0 %296
        %300 = vset.pattern.permute.xlu0 0
        %301 = vperm.xlu0 %300, %v283
        %v302 = vpop.permute.xlu0 %301
        %v304 = vlaneseq
        %v305 = vshrl.u32 %v304, 7
        %v306 = vsub.s32 0, %v305
        %v307 = vrot.slane %v279, %v306
        %v308 = vmul.f32 %v287, %v307
        %v309 = vmul.f32 %v292, %v307
        %v310 = vmul.f32 %v297, %v307
        %v311 = vmul.f32 %v302, %v307
        %312 = vset.pattern.permute.xlu0 1
        %313 = vperm.xlu0 %312, %v280
        %v314 = vpop.permute.xlu0 %313
        %316 = vset.pattern.permute.xlu0 1
        %317 = vperm.xlu0 %316, %v281
        %v318 = vpop.permute.xlu0 %317
        %320 = vset.pattern.permute.xlu0 1
        %321 = vperm.xlu0 %320, %v282
        %v322 = vpop.permute.xlu0 %321
        %324 = vset.pattern.permute.xlu0 1
        %325 = vperm.xlu0 %324, %v283
        %v326 = vpop.permute.xlu0 %325
        %v328 = vlaneseq
        %v329 = vshrl.u32 %v328, 7
        %v330 = vsub.s32 1, %v329
        %v331 = vrot.slane %v279, %v330
        %v332 = vmul.f32 %v314, %v331
        %v333 = vmul.f32 %v318, %v331
        %v334 = vmul.f32 %v322, %v331
        %v335 = vmul.f32 %v326, %v331
        %v336 = vadd.f32 %v308, %v332
        %v337 = vadd.f32 %v309, %v333
        %v338 = vadd.f32 %v310, %v334
        %v339 = vadd.f32 %v311, %v335
        %341 = vset.pattern.permute.xlu0 0
        %342 = vperm.xlu0 %341, %v274
        %v343 = vpop.permute.xlu0 %342
        %346 = vset.pattern.permute.xlu0 0
        %347 = vperm.xlu0 %346, %v275
        %v348 = vpop.permute.xlu0 %347
        %351 = vset.pattern.permute.xlu0 0
        %352 = vperm.xlu0 %351, %v276
        %v353 = vpop.permute.xlu0 %352
        %356 = vset.pattern.permute.xlu0 0
        %357 = vperm.xlu0 %356, %v277
        %v358 = vpop.permute.xlu0 %357
        %v360 = vadd.f32 %v336, %v343
        %v361 = vadd.f32 %v337, %v348
        %v362 = vadd.f32 %v338, %v353
        %v363 = vadd.f32 %v339, %v358
        %v364 = vmax.f32 %v360, 0.0
        %v365 = vmax.f32 %v361, 0.0
        %v366 = vmax.f32 %v362, 0.0
        %v367 = vmax.f32 %v363, 0.0
        %v368 = vld [vmem:[%s3] sm:$0xff]
        %v369 = vld [vmem:[%s3 + $0x8] sm:$0xff]
        %v370 = vld [vmem:[%s3 + $0x10] sm:$0xff]
        %v371 = vld [vmem:[%s3 + $0x18] sm:$0xff]
        %v372 = vld [vmem:[%s4] sm:$0xff]
        %v373 = vld [vmem:[%s4 + $0x8] sm:$0xff]
        %v374 = vld [vmem:[%s4 + $0x10] sm:$0xff]
        %v375 = vld [vmem:[%s4 + $0x18] sm:$0xff]
        %377 = vset.pattern.permute.xlu0 0
        %378 = vperm.xlu0 %377, %v372
        %v379 = vpop.permute.xlu0 %378
        %382 = vset.pattern.permute.xlu0 0
        %383 = vperm.xlu0 %382, %v373
        %v384 = vpop.permute.xlu0 %383
        %387 = vset.pattern.permute.xlu0 0
        %388 = vperm.xlu0 %387, %v374
        %v389 = vpop.permute.xlu0 %388
        %392 = vset.pattern.permute.xlu0 0
        %393 = vperm.xlu0 %392, %v375
        %v394 = vpop.permute.xlu0 %393
        %vm396 = vcmask 261120
        %v398 = vsel %vm396, %v368, 0
        %v401 = vsel %vm396, %v369, 0
        %v404 = vsel %vm396, %v370, 0
        %v407 = vsel %vm396, %v371, 0
        %409 = vmatprep.subr.mxu0 0.0
        %410 = vmatpush1.msra.mxu0 %v364
        %411 = vmatprep.subr.mxu0 0.0
        %412 = vmatpush1.msra.mxu0 %v365
        %413 = vmatprep.subr.mxu0 0.0
        %414 = vmatpush1.msra.mxu0 %v366
        %415 = vmatprep.subr.mxu0 0.0
        %416 = vmatpush1.msra.mxu0 %v367
        %417 = vmatprep.subr.mxu0 0.0
        %418 = vmatpush1.msra.mxu0 0.0
        %419 = vmatprep.subr.mxu0 0.0
        %420 = vmatpush1.msra.mxu0 0.0
        %421 = vmatprep.subr.mxu0 0.0
        %422 = vmatpush1.msra.mxu0 0.0
        %423 = vmatprep.subr.mxu0 0.0
        %424 = vmatpush1.msra.mxu0 0.0
        %425 = vmatprep.subr.mxu0 0.0
        %426 = vmatpush1.msra.mxu0 0.0
        %427 = vmatprep.subr.mxu0 0.0
        %428 = vmatpush1.msra.mxu0 0.0
        %429 = vmatprep.subr.mxu0 0.0
        %430 = vmatpush1.msra.mxu0 0.0
        %431 = vmatprep.subr.mxu0 0.0
        %432 = vmatpush1.msra.mxu0 0.0
        %433 = vmatprep.subr.mxu0 0.0
        %434 = vmatpush1.msra.mxu0 0.0
        %435 = vmatprep.subr.mxu0 0.0
        %436 = vmatpush1.msra.mxu0 0.0
        %437 = vmatprep.subr.mxu0 0.0
        %438 = vmatpush1.msra.mxu0 0.0
        %439 = vmatprep.subr.mxu0 0.0
        %440 = vmatpush1.msra.mxu0 0.0
        %441 = vmatprep.subr.mxu0 0.0
        %442 = vmatpush1.msra.mxu0 0.0
        %443 = vmatprep.subr.mxu0 0.0
        %444 = vmatpush1.msra.mxu0 0.0
        %445 = vmatprep.subr.mxu0 0.0
        %446 = vmatpush1.msra.mxu0 0.0
        %447 = vmatprep.subr.mxu0 0.0
        %448 = vmatpush1.msra.mxu0 0.0
        %449 = vmatprep.subr.mxu0 0.0
        %450 = vmatpush1.msra.mxu0 0.0
        %451 = vmatprep.subr.mxu0 0.0
        %452 = vmatpush1.msra.mxu0 0.0
        %453 = vmatprep.subr.mxu0 0.0
        %454 = vmatpush1.msra.mxu0 0.0
        %455 = vmatprep.subr.mxu0 0.0
        %456 = vmatpush1.msra.mxu0 0.0
        %457 = vmatprep.subr.mxu0 0.0
        %458 = vmatpush1.msra.mxu0 0.0
        %459 = vmatprep.subr.mxu0 0.0
        %460 = vmatpush1.msra.mxu0 0.0
        %461 = vmatprep.subr.mxu0 0.0
        %462 = vmatpush1.msra.mxu0 0.0
        %463 = vmatprep.subr.mxu0 0.0
        %464 = vmatpush1.msra.mxu0 0.0
        %465 = vmatprep.subr.mxu0 0.0
        %466 = vmatpush1.msra.mxu0 0.0
        %467 = vmatprep.subr.mxu0 0.0
        %468 = vmatpush1.msra.mxu0 0.0
        %469 = vmatprep.subr.mxu0 0.0
        %470 = vmatpush1.msra.mxu0 0.0
        %471 = vmatprep.subr.mxu0 0.0
        %472 = vmatpush1.msra.mxu0 0.0
        %473 = vmatprep.mubr.f32.mxu0 0.0
        %474 = vmatmul.mubr.f32.gmra.mrb[0].mxu0 %v398
        %v475 = vpop.f32.mrb[0].mxu0
        %v476 = vadd.f32 %v379, %v475
        %v477 = vpop.f32.mrb[0].mxu0
        %478 = vmatprep.mubr.f32.mxu0 0.0
        %479 = vmatmul.mubr.f32.gmra.mrb[0].mxu0 %v401
        %v480 = vpop.f32.mrb[0].mxu0
        %v481 = vadd.f32 %v384, %v480
        %v482 = vpop.f32.mrb[0].mxu0
        %483 = vmatprep.mubr.f32.mxu0 0.0
        %484 = vmatmul.mubr.f32.gmra.mrb[0].mxu0 %v404
        %v485 = vpop.f32.mrb[0].mxu0
        %v486 = vadd.f32 %v389, %v485
        %v487 = vpop.f32.mrb[0].mxu0
        %488 = vmatprep.mubr.f32.mxu0 0.0
        %489 = vmatmul.mubr.f32.gmra.mrb[0].mxu0 %v407
        %v490 = vpop.f32.mrb[0].mxu0
        %v491 = vadd.f32 %v394, %v490
        %v492 = vpop.f32.mrb[0].mxu0
        %493 = vdwg.mxu0
        %v494 = vmax.f32 %v476, 0.0
        %v495 = vmax.f32 %v481, 0.0
        %v496 = vmax.f32 %v486, 0.0
        %v497 = vmax.f32 %v491, 0.0
        %s498 = scalar_lea.vmem %s3, 32
        %v499 = vld [vmem:[%s498] sm:$0xff]
        %v500 = vld [vmem:[%s498 + $0x8] sm:$0xff]
        %v501 = vld [vmem:[%s498 + $0x10] sm:$0xff]
        %v502 = vld [vmem:[%s498 + $0x18] sm:$0xff]
        %s503 = scalar_lea.vmem %s4, 32
        %v504 = vld [vmem:[%s503] sm:$0xff]
        %v505 = vld [vmem:[%s503 + $0x8] sm:$0xff]
        %v506 = vld [vmem:[%s503 + $0x10] sm:$0xff]
        %v507 = vld [vmem:[%s503 + $0x18] sm:$0xff]
        %509 = vset.pattern.permute.xlu0 0
        %510 = vperm.xlu0 %509, %v504
        %v511 = vpop.permute.xlu0 %510
        %514 = vset.pattern.permute.xlu0 0
        %515 = vperm.xlu0 %514, %v505
        %v516 = vpop.permute.xlu0 %515
        %519 = vset.pattern.permute.xlu0 0
        %520 = vperm.xlu0 %519, %v506
        %v521 = vpop.permute.xlu0 %520
        %524 = vset.pattern.permute.xlu0 0
        %525 = vperm.xlu0 %524, %v507
        %v526 = vpop.permute.xlu0 %525
        %v529 = vsel %vm396, %v499, 0
        %v532 = vsel %vm396, %v500, 0
        %v535 = vsel %vm396, %v501, 0
        %v538 = vsel %vm396, %v502, 0
        %540 = vmatprep.subr.mxu0 0.0
        %541 = vmatpush1.msra.mxu0 %v494
        %542 = vmatprep.subr.mxu0 0.0
        %543 = vmatpush1.msra.mxu0 %v495
        %544 = vmatprep.subr.mxu0 0.0
        %545 = vmatpush1.msra.mxu0 %v496
        %546 = vmatprep.subr.mxu0 0.0
        %547 = vmatpush1.msra.mxu0 %v497
        %548 = vmatprep.subr.mxu0 0.0
        %549 = vmatpush1.msra.mxu0 0.0
        %550 = vmatprep.subr.mxu0 0.0
        %551 = vmatpush1.msra.mxu0 0.0
        %552 = vmatprep.subr.mxu0 0.0
        %553 = vmatpush1.msra.mxu0 0.0
        %554 = vmatprep.subr.mxu0 0.0
        %555 = vmatpush1.msra.mxu0 0.0
        %556 = vmatprep.subr.mxu0 0.0
        %557 = vmatpush1.msra.mxu0 0.0
        %558 = vmatprep.subr.mxu0 0.0
        %559 = vmatpush1.msra.mxu0 0.0
        %560 = vmatprep.subr.mxu0 0.0
        %561 = vmatpush1.msra.mxu0 0.0
        %562 = vmatprep.subr.mxu0 0.0
        %563 = vmatpush1.msra.mxu0 0.0
        %564 = vmatprep.subr.mxu0 0.0
        %565 = vmatpush1.msra.mxu0 0.0
        %566 = vmatprep.subr.mxu0 0.0
        %567 = vmatpush1.msra.mxu0 0.0
        %568 = vmatprep.subr.mxu0 0.0
        %569 = vmatpush1.msra.mxu0 0.0
        %570 = vmatprep.subr.mxu0 0.0
        %571 = vmatpush1.msra.mxu0 0.0
        %572 = vmatprep.subr.mxu0 0.0
        %573 = vmatpush1.msra.mxu0 0.0
        %574 = vmatprep.subr.mxu0 0.0
        %575 = vmatpush1.msra.mxu0 0.0
        %576 = vmatprep.subr.mxu0 0.0
        %577 = vmatpush1.msra.mxu0 0.0
        %578 = vmatprep.subr.mxu0 0.0
        %579 = vmatpush1.msra.mxu0 0.0
        %580 = vmatprep.subr.mxu0 0.0
        %581 = vmatpush1.msra.mxu0 0.0
        %582 = vmatprep.subr.mxu0 0.0
        %583 = vmatpush1.msra.mxu0 0.0
        %584 = vmatprep.subr.mxu0 0.0
        %585 = vmatpush1.msra.mxu0 0.0
        %586 = vmatprep.subr.mxu0 0.0
        %587 = vmatpush1.msra.mxu0 0.0
        %588 = vmatprep.subr.mxu0 0.0
        %589 = vmatpush1.msra.mxu0 0.0
        %590 = vmatprep.subr.mxu0 0.0
        %591 = vmatpush1.msra.mxu0 0.0
        %592 = vmatprep.subr.mxu0 0.0
        %593 = vmatpush1.msra.mxu0 0.0
        %594 = vmatprep.subr.mxu0 0.0
        %595 = vmatpush1.msra.mxu0 0.0
        %596 = vmatprep.subr.mxu0 0.0
        %597 = vmatpush1.msra.mxu0 0.0
        %598 = vmatprep.subr.mxu0 0.0
        %599 = vmatpush1.msra.mxu0 0.0
        %600 = vmatprep.subr.mxu0 0.0
        %601 = vmatpush1.msra.mxu0 0.0
        %602 = vmatprep.subr.mxu0 0.0
        %603 = vmatpush1.msra.mxu0 0.0
        %604 = vmatprep.mubr.f32.mxu0 0.0
        %605 = vmatmul.mubr.f32.gmra.mrb[0].mxu0 %v529
        %v606 = vpop.f32.mrb[0].mxu0
        %v607 = vadd.f32 %v511, %v606
        %v608 = vpop.f32.mrb[0].mxu0
        %609 = vmatprep.mubr.f32.mxu0 0.0
        %610 = vmatmul.mubr.f32.gmra.mrb[0].mxu0 %v532
        %v611 = vpop.f32.mrb[0].mxu0
        %v612 = vadd.f32 %v516, %v611
        %v613 = vpop.f32.mrb[0].mxu0
        %614 = vmatprep.mubr.f32.mxu0 0.0
        %615 = vmatmul.mubr.f32.gmra.mrb[0].mxu0 %v535
        %v616 = vpop.f32.mrb[0].mxu0
        %v617 = vadd.f32 %v521, %v616
        %v618 = vpop.f32.mrb[0].mxu0
        %619 = vmatprep.mubr.f32.mxu0 0.0
        %620 = vmatmul.mubr.f32.gmra.mrb[0].mxu0 %v538
        %v621 = vpop.f32.mrb[0].mxu0
        %v622 = vadd.f32 %v526, %v621
        %v623 = vpop.f32.mrb[0].mxu0
        %624 = vdwg.mxu0
        %v625 = vmax.f32 %v607, 0.0
        %v626 = vmax.f32 %v612, 0.0
        %v627 = vmax.f32 %v617, 0.0
        %v628 = vmax.f32 %v622, 0.0
        %v629 = vld [vmem:[%s5] sm:$0x7]
        %631 = vset.pattern.permute.xlu0 0
        %632 = vperm.xlu0 %631, %v278
        %v633 = vpop.permute.xlu0 %632
        %v636 = vsel %vm396, %v629, 0
        %638 = vmatprep.subr.mxu0 0.0
        %639 = vmatpush1.msra.mxu0 %v625
        %640 = vmatprep.subr.mxu0 0.0
        %641 = vmatpush1.msra.mxu0 %v626
        %642 = vmatprep.subr.mxu0 0.0
        %643 = vmatpush1.msra.mxu0 %v627
        %644 = vmatprep.subr.mxu0 0.0
        %645 = vmatpush1.msra.mxu0 %v628
        %646 = vmatprep.subr.mxu0 0.0
        %647 = vmatpush1.msra.mxu0 0.0
        %648 = vmatprep.subr.mxu0 0.0
        %649 = vmatpush1.msra.mxu0 0.0
        %650 = vmatprep.subr.mxu0 0.0
        %651 = vmatpush1.msra.mxu0 0.0
        %652 = vmatprep.subr.mxu0 0.0
        %653 = vmatpush1.msra.mxu0 0.0
        %654 = vmatprep.subr.mxu0 0.0
        %655 = vmatpush1.msra.mxu0 0.0
        %656 = vmatprep.subr.mxu0 0.0
        %657 = vmatpush1.msra.mxu0 0.0
        %658 = vmatprep.subr.mxu0 0.0
        %659 = vmatpush1.msra.mxu0 0.0
        %660 = vmatprep.subr.mxu0 0.0
        %661 = vmatpush1.msra.mxu0 0.0
        %662 = vmatprep.subr.mxu0 0.0
        %663 = vmatpush1.msra.mxu0 0.0
        %664 = vmatprep.subr.mxu0 0.0
        %665 = vmatpush1.msra.mxu0 0.0
        %666 = vmatprep.subr.mxu0 0.0
        %667 = vmatpush1.msra.mxu0 0.0
        %668 = vmatprep.subr.mxu0 0.0
        %669 = vmatpush1.msra.mxu0 0.0
        %670 = vmatprep.subr.mxu0 0.0
        %671 = vmatpush1.msra.mxu0 0.0
        %672 = vmatprep.subr.mxu0 0.0
        %673 = vmatpush1.msra.mxu0 0.0
        %674 = vmatprep.subr.mxu0 0.0
        %675 = vmatpush1.msra.mxu0 0.0
        %676 = vmatprep.subr.mxu0 0.0
        %677 = vmatpush1.msra.mxu0 0.0
        %678 = vmatprep.subr.mxu0 0.0
        %679 = vmatpush1.msra.mxu0 0.0
        %680 = vmatprep.subr.mxu0 0.0
        %681 = vmatpush1.msra.mxu0 0.0
        %682 = vmatprep.subr.mxu0 0.0
        %683 = vmatpush1.msra.mxu0 0.0
        %684 = vmatprep.subr.mxu0 0.0
        %685 = vmatpush1.msra.mxu0 0.0
        %686 = vmatprep.subr.mxu0 0.0
        %687 = vmatpush1.msra.mxu0 0.0
        %688 = vmatprep.subr.mxu0 0.0
        %689 = vmatpush1.msra.mxu0 0.0
        %690 = vmatprep.subr.mxu0 0.0
        %691 = vmatpush1.msra.mxu0 0.0
        %692 = vmatprep.subr.mxu0 0.0
        %693 = vmatpush1.msra.mxu0 0.0
        %694 = vmatprep.subr.mxu0 0.0
        %695 = vmatpush1.msra.mxu0 0.0
        %696 = vmatprep.subr.mxu0 0.0
        %697 = vmatpush1.msra.mxu0 0.0
        %698 = vmatprep.subr.mxu0 0.0
        %699 = vmatpush1.msra.mxu0 0.0
        %700 = vmatprep.subr.mxu0 0.0
        %701 = vmatpush1.msra.mxu0 0.0
        %702 = vmatprep.mubr.f32.mxu0 0.0
        %703 = vmatmul.mubr.f32.gmra.mrb[0].mxu0 %v636
        %v704 = vpop.f32.mrb[0].mxu0
        %v705 = vadd.f32 %v633, %v704
        %v706 = vpop.f32.mrb[0].mxu0
        %707 = vdwg.mxu0
        %708 = vst [vmem:[%s269] sm:$0x7] %v705
        %s709 = sand.u32 %s181, 1
        %s710 = scalar_lea.sflag [#allocation3], %s709
        %s711 = sand.u32 %s181, 1
        %s712 = smul.addr %s711, 4
        %s713 = scalar_lea.vmem [#allocation2], %s712
        // Predicated region
        $region49: #{tpu_custom_call.1} parent=47 // pred_check
          %p714 = pneg %p191
        $region50: #{tpu_custom_call.1} parent=47 // pred_check_branch
          %716 = sbr.rel (%p714) target = $region52
        $region51: #{tpu_custom_call.1} parent=47 // pred_region
          %s718 = ssub.s32 64, 64
          %719 = vsyncadd %s710, %s718
          %s720 = smul.addr %s21, 64
          %s721 = scalar_lea.hbm %s7, %s720
          %s723 = sshll.u32 %s713, 4
          %s724 = int_to_ptr.vmem [resolvable:$true] %s723
          %726 = dma.vmem_to_hbm [thread:$0]  %s724, 64, %s721, %s710
        $region52: #{tpu_custom_call.1} parent=47 // pred_fallthru
          _
      $region48: #{tpu_custom_call.1} parent=5 // pred_fallthru
        _
      %p727 = scmp.le.s32.totalorder 2, %s16
      // Predicated region
      $region53: #{tpu_custom_call.1} parent=5 // pred_check
        %p728 = pneg %p727
      $region54: #{tpu_custom_call.1} parent=5 // pred_check_branch
        %730 = sbr.rel (%p728) target = $region56
      $region55: #{tpu_custom_call.1} parent=5 // pred_region
        %s731 = ssub.s32 %s16, 2
        // Predicated region
        $region57: #{tpu_custom_call.1} parent=55 // pred_check
          %p732 = pneg %p197
        $region58: #{tpu_custom_call.1} parent=55 // pred_check_branch
          %734 = sbr.rel (%p732) target = $region60
        $region59: #{tpu_custom_call.1} parent=55 // pred_region
          %s735 = sand.u32 %s182, 1
          %s736 = scalar_lea.sflag [#allocation3], %s735
          %s737 = sand.u32 %s182, 1
          %s738 = smul.addr %s737, 4
          %s739 = scalar_lea.vmem [#allocation2], %s738
          %740 = dma.done %s736, 64
        $region60: #{tpu_custom_call.1} parent=55 // pred_fallthru
          _
      $region56: #{tpu_custom_call.1} parent=5 // pred_fallthru
        _
    $region6: #{tpu_custom_call.1} parent=1 // loop_footer
      %s20 = sadd.s32 1, %s16
    $region7: #{tpu_custom_call.1} parent=1 // loop_footer_branch
      %15 = sbr.rel target = $region3
    $region8: #{tpu_custom_call.1} parent=1 // loop_exit
      _
    %741 = vsyncpa [#allocation3], 1
    %s742 = scalar_lea.sflag [#allocation3], 1
    %743 = vsyncpa %s742, 1

</llo_original>
